<compile_context>
chip_gen: v7x
topology: tpu7x:2x2x1
jax: 0.10.0
libtpu: 0.0.40
codegen_flags: <defaults>
</compile_context>

<pallas_src>
import functools

import jax
import jax.numpy as jnp
from jax.experimental import pallas as pl
from jax.experimental.pallas import tpu as pltpu

LANES = 128
SUBLANES = 8
MAX_TILE_ROWS = 8192          # cap so 2x2 input buffers + temps fit v7x's 64 MiB VMEM


def _tensorcores_per_chip():
    """Best-effort TC count; the leading split axis only helps on multi-TC chips."""
    # TODO(synk): on v7x, verify via xprof that the "parallel" leading axis really
    # shards across both TensorCores; if not, switch it to pltpu.CORE_PARALLEL.
    try:
        kind = jax.devices()[0].device_kind.lower()
    except Exception:
        return 2
    for single_tc in ("lite", "v5e", "v6e"):   # v5e / v6e: one TensorCore per chip
        if single_tc in kind:
            return 1
    return 2


def _dice_partials_kernel(p_ref, t_ref, acc_ref, *,
                          tile_rows, tiles_per_split, n_tiles, needs_bounds):
    i = pl.program_id(1)   # sequential reduction step within the split

    @pl.when(i == 0)
    def _init():
        acc_ref[...] = jnp.zeros_like(acc_ref)

    def accumulate():
        x = p_ref[...].astype(jnp.float32)
        t = t_ref[...].astype(jnp.float32)
        h = jnp.tanh(0.5 * x)          # sigmoid(x) = 0.5*h + 0.5, applied in the wrapper

        def fold(v):
            # (tile_rows, 128) -> (8, 128): elementwise vreg adds on the VPU; the
            # expensive full cross-lane/sublane reduction happens once, outside.
            return jnp.sum(v.reshape(tile_rows // SUBLANES, SUBLANES, LANES), axis=0)

        acc_ref[0] += fold(t * h)      # running sum(t * tanh(x/2))
        acc_ref[1] += fold(h)          # running sum(tanh(x/2))
        acc_ref[2] += fold(t)          # running sum(t)

    if needs_bounds:
        # Skip blocks whose index_map was clamped (duplicated last block on the
        # final split when n_tiles is not a multiple of n_splits).
        c = pl.program_id(0)

        @pl.when(c * tiles_per_split + i < n_tiles)
        def _():
            accumulate()
    else:
        accumulate()


def dice_loss(preds, targets, *, smooth=1.0, weight=None, tile_rows=4096, n_splits=None):
    """Pallas implementation of DiceLoss.forward. Returns a scalar float32.

    `weight` is an optional *scalar* class-balance factor (as in the module's
    typical use).
    """
    # TODO(synk): per-element `weight` tensors would need the weight factor streamed
    # through the kernel; only the scalar class-balance weight is supported here.
    p_flat = preds.reshape(-1)
    t_flat = targets.reshape(-1)
    n_total = int(p_flat.shape[0])

    inter = jnp.float32(0.0)
    p_sum = jnp.float32(0.0)
    t_sum = jnp.float32(0.0)

    full_rows = n_total // LANES

    # Main region handled by the kernel: a whole number of (tr, 128) blocks so the
    # kernel never sees a partial edge block and needs no masking at all.
    tr = max(SUBLANES, min((int(tile_rows) // SUBLANES) * SUBLANES, MAX_TILE_ROWS))
    if full_rows >= SUBLANES:
        tr = min(tr, (full_rows // SUBLANES) * SUBLANES)
        n_tiles = full_rows // tr
    else:
        n_tiles = 0
    kernel_rows = n_tiles * tr
    n_main = kernel_rows * LANES

    if n_tiles > 0:
        if n_splits is None:
            n_splits = _tensorcores_per_chip()
        n_splits = max(1, min(int(n_splits), n_tiles))
        tiles_per_split = pl.cdiv(n_tiles, n_splits)
        needs_bounds = (n_splits * tiles_per_split) != n_tiles
        last_block = n_tiles - 1

        p2d = p_flat[:n_main].reshape(kernel_rows, LANES)   # identity slice when aligned
        t2d = t_flat[:n_main].reshape(kernel_rows, LANES)

        if needs_bounds:
            def in_map(c, i):
                # Clamp so a split never DMAs past the array; the kernel skips the
                # (duplicated) clamped block's compute entirely.
                return (jnp.minimum(c * tiles_per_split + i, last_block), 0)
        else:
            def in_map(c, i):
                return (c * tiles_per_split + i, 0)

        # VMEM budget: 2 inputs x 2 pipeline buffers (input dtype) + ~4 full-tile f32
        # temporaries (t_f32, h, t*h, fold slack) + headroom.  Explicitly sized so
        # large tiles clear v5e's 16 MiB default scoped limit while staying far below
        # v7x's 64 MiB physical VMEM (tr <= 8192 -> <= ~36 MiB).
        blk_in_bytes = tr * LANES * (jnp.dtype(p2d.dtype).itemsize +
                                     jnp.dtype(t2d.dtype).itemsize)
        vmem_limit = 2 * blk_in_bytes + 4 * tr * LANES * 4 + (4 << 20)
        vmem_limit = int(min(max(vmem_limit, 32 << 20), 100 << 20))

        kernel = functools.partial(
            _dice_partials_kernel,
            tile_rows=tr, tiles_per_split=tiles_per_split,
            n_tiles=n_tiles, needs_bounds=needs_bounds)

        partials = pl.pallas_call(
            kernel,
            out_shape=jax.ShapeDtypeStruct((n_splits, 3, SUBLANES, LANES), jnp.float32),
            grid_spec=pltpu.PrefetchScalarGridSpec(
                num_scalar_prefetch=0,
                grid=(n_splits, tiles_per_split),
                in_specs=[
                    pl.BlockSpec((tr, LANES), in_map),
                    pl.BlockSpec((tr, LANES), in_map),
                ],
                out_specs=pl.BlockSpec((None, 3, SUBLANES, LANES),
                                       lambda c, i: (c, 0, 0, 0)),
            ),
            compiler_params=pltpu.CompilerParams(
                dimension_semantics=("parallel", "arbitrary"),
                vmem_limit_bytes=vmem_limit,
            ),
        )(p2d, t2d)

        sums = jnp.sum(partials, axis=(0, 2, 3))     # tiny final combine, outside kernel
        sum_th, sum_h, sum_t = sums[0], sums[1], sums[2]
        # Un-hoist the sigmoid affine: sigmoid(x) = 0.5*tanh(x/2) + 0.5.
        p_sum = p_sum + 0.5 * sum_h + 0.5 * jnp.float32(n_main)
        inter = inter + 0.5 * sum_th + 0.5 * sum_t
        t_sum = t_sum + sum_t

    # Ragged tail (< tr*128 elements): plain-JAX reduction, no pad copy, no in-kernel mask.
    if n_total - n_main:
        pt = jax.nn.sigmoid(p_flat[n_main:].astype(jnp.float32))
        tt = t_flat[n_main:].astype(jnp.float32)
        inter = inter + jnp.sum(pt * tt)
        p_sum = p_sum + jnp.sum(pt)
        t_sum = t_sum + jnp.sum(tt)

    dice = (2.0 * inter + smooth) / (p_sum + t_sum + smooth)
    loss = 1.0 - dice
    if weight is not None:
        # (loss * (w*t + (1-w)*(1-t))).mean() == loss * mean(weight_factor), and
        # mean(weight_factor) only depends on sum(t) and N.
        w = jnp.float32(weight)
        nt = jnp.float32(n_total)
        loss = loss * ((w * t_sum + (1.0 - w) * (nt - t_sum)) / nt)
    return loss


def dice_loss_ref(preds, targets, *, smooth=1.0, weight=None):
    """Pure-JAX reference mirroring the PyTorch module."""
    p = jax.nn.sigmoid(preds.astype(jnp.float32)).reshape(-1)
    t = targets.astype(jnp.float32).reshape(-1)
    inter = jnp.sum(p * t)
    dice = (2.0 * inter + smooth) / (jnp.sum(p) + jnp.sum(t) + smooth)
    loss = 1.0 - dice
    if weight is not None:
        wf = weight * t + (1.0 - weight) * (1.0 - t)
        loss = jnp.mean(loss * wf)
    return loss


if __name__ == "__main__":
    key = jax.random.PRNGKey(0)
    k1, k2, k3, k4, k5, k6 = jax.random.split(key, 6)

    smooth = 1.0
    weight = 0.7

    # Small NCHW shapes: batch=2, channels=4, spatial=16x16 (2048 elements).
    preds = jax.random.normal(k1, (2, 4, 16, 16), dtype=jnp.float32)
    targets = (jax.random.uniform(k2, (2, 4, 16, 16)) > 0.5).astype(jnp.float32)

    out = jax.block_until_ready(dice_loss(preds, targets, smooth=smooth, weight=weight))
    ref = dice_loss_ref(preds, targets, smooth=smooth, weight=weight)
    assert jnp.allclose(out, ref, atol=1e-5, rtol=1e-5), (out, ref)

    # weight=None path.
    out_nw = jax.block_until_ready(dice_loss(preds, targets, smooth=smooth, weight=None))
    ref_nw = dice_loss_ref(preds, targets, smooth=smooth, weight=None)
    assert jnp.allclose(out_nw, ref_nw, atol=1e-5, rtol=1e-5), (out_nw, ref_nw)

    # Multi-tile sequential reduction path (small tile_rows to force >1 tile).
    out_mt = jax.block_until_ready(
        dice_loss(preds, targets, smooth=smooth, weight=weight, tile_rows=8, n_splits=1))
    assert jnp.allclose(out_mt, ref, atol=1e-5, rtol=1e-5), (out_mt, ref)

    # 2-way split with an odd tile count: exercises the clamped index_map + pl.when skip.
    preds_s = jax.random.normal(k3, (3, 4, 16, 16), dtype=jnp.float32)
    targets_s = (jax.random.uniform(k4, (3, 4, 16, 16)) > 0.5).astype(jnp.float32)
    out_s = jax.block_until_ready(
        dice_loss(preds_s, targets_s, smooth=smooth, weight=weight, tile_rows=8, n_splits=2))
    ref_s = dice_loss_ref(preds_s, targets_s, smooth=smooth, weight=weight)
    assert jnp.allclose(out_s, ref_s, atol=1e-5, rtol=1e-5), (out_s, ref_s)

    # Odd element count (3*5*7*11 = 1155): kernel prefix + plain-JAX ragged tail.
    preds_o = jax.random.normal(k5, (3, 5, 7, 11), dtype=jnp.float32)
    targets_o = (jax.random.uniform(k6, (3, 5, 7, 11)) > 0.5).astype(jnp.float32)
    out_o = jax.block_until_ready(dice_loss(preds_o, targets_o, smooth=smooth, weight=weight))
    ref_o = dice_loss_ref(preds_o, targets_o, smooth=smooth, weight=weight)
    assert jnp.allclose(out_o, ref_o, atol=1e-5, rtol=1e-5), (out_o, ref_o)

    # bf16 preds passed through unconverted (in-kernel astype widens to f32).
    preds_bf = preds.astype(jnp.bfloat16)
    out_bf = jax.block_until_ready(dice_loss(preds_bf, targets, smooth=smooth, weight=weight))
    ref_bf = dice_loss_ref(preds_bf, targets, smooth=smooth, weight=weight)
    assert jnp.allclose(out_bf, ref_bf, atol=1e-5, rtol=1e-5), (out_bf, ref_bf)

    print("KERNEL_OK")
</pallas_src>

<mosaic_0001>
module attributes {stable_mosaic.version = 11 : i64} {
  func.func @_dice_partials_kernel(%arg0: i32, %arg1: i32, %arg2: memref<16x128xf32, #tpu.memory_space<vmem>>, %arg3: memref<16x128xf32, #tpu.memory_space<vmem>>, %arg4: memref<1x3x8x128xf32, #tpu.memory_space<vmem>>) attributes {dimension_semantics = [#tpu.dimension_semantics<parallel>, #tpu.dimension_semantics<arbitrary>], iteration_bounds = array<i64: 1, 1>, scalar_prefetch = 0 : i64, scratch_operands = 0 : i64, tpu.core_type = #tpu.core_type<tc>, window_params = [{transform_indices = @transform_0, window_bounds = array<i64: 16, 128>}, {transform_indices = @transform_1, window_bounds = array<i64: 16, 128>}, {transform_indices = @transform_2, window_bounds = array<i64: 1, 3, 8, 128>}]} {
    %c0_i32 = arith.constant 0 : i32
    %0 = arith.cmpi eq, %arg1, %c0_i32 : i32
    %1 = arith.extui %0 : i1 to i32
    %c0_i32_0 = arith.constant 0 : i32
    %2 = arith.cmpi ne, %1, %c0_i32_0 : i32
    scf.if %2 {
      %cst_29 = arith.constant 0.000000e+00 : f32
      %33 = vector.broadcast %cst_29 : f32 to vector<3x8x128xf32>
      %c0_30 = arith.constant 0 : index
      %c0_31 = arith.constant 0 : index
      %c0_32 = arith.constant 0 : index
      %c0_33 = arith.constant 0 : index
      %34 = vector.load %arg4[%c0_30, %c0_31, %c0_32, %c0_33] : memref<1x3x8x128xf32, #tpu.memory_space<vmem>>, vector<1x3x8x128xf32>
      %35 = vector.shape_cast %34 : vector<1x3x8x128xf32> to vector<3x8x128xf32>
      %36 = vector.shape_cast %33 : vector<3x8x128xf32> to vector<1x3x8x128xf32>
      tpu.vector_store %arg4[%c0_30, %c0_31, %c0_32, %c0_33], %36 {strides = array<i32>} : memref<1x3x8x128xf32, #tpu.memory_space<vmem>>, vector<1x3x8x128xf32>,
    } else {
    }
    %c0 = arith.constant 0 : index
    %c0_1 = arith.constant 0 : index
    %3 = vector.load %arg2[%c0, %c0_1] : memref<16x128xf32, #tpu.memory_space<vmem>>, vector<16x128xf32>
    %c0_2 = arith.constant 0 : index
    %c0_3 = arith.constant 0 : index
    %4 = vector.load %arg3[%c0_2, %c0_3] : memref<16x128xf32, #tpu.memory_space<vmem>>, vector<16x128xf32>
    %cst = arith.constant 5.000000e-01 : f32
    %5 = vector.broadcast %cst : f32 to vector<16x128xf32>
    %6 = arith.mulf %5, %3 : vector<16x128xf32>
    %7 = math.tanh %6 : vector<16x128xf32>
    %c0_4 = arith.constant 0 : index
    %c0_5 = arith.constant 0 : index
    %c0_6 = arith.constant 0 : index
    %c0_7 = arith.constant 0 : index
    %8 = vector.load %arg4[%c0_4, %c0_5, %c0_6, %c0_7] : memref<1x3x8x128xf32, #tpu.memory_space<vmem>>, vector<1x1x8x128xf32>
    %9 = vector.shape_cast %8 : vector<1x1x8x128xf32> to vector<8x128xf32>
    %10 = arith.mulf %4, %7 : vector<16x128xf32>
    %11 = vector.shape_cast %10 : vector<16x128xf32> to vector<2x8x128xf32>
    %cst_8 = arith.constant dense<0.000000e+00> : vector<8x128xf32>
    %12 = vector.multi_reduction <add>, %11, %cst_8 [0] : vector<2x8x128xf32> to vector<8x128xf32>
    %13 = arith.addf %9, %12 : vector<8x128xf32>
    %c0_9 = arith.constant 0 : index
    %c0_10 = arith.constant 0 : index
    %c0_11 = arith.constant 0 : index
    %c0_12 = arith.constant 0 : index
    %14 = vector.load %arg4[%c0_9, %c0_10, %c0_11, %c0_12] : memref<1x3x8x128xf32, #tpu.memory_space<vmem>>, vector<1x1x8x128xf32>
    %15 = vector.shape_cast %14 : vector<1x1x8x128xf32> to vector<8x128xf32>
    %16 = vector.shape_cast %13 : vector<8x128xf32> to vector<1x1x8x128xf32>
    tpu.vector_store %arg4[%c0_9, %c0_10, %c0_11, %c0_12], %16 {strides = array<i32>} : memref<1x3x8x128xf32, #tpu.memory_space<vmem>>, vector<1x1x8x128xf32>,
    %c0_13 = arith.constant 0 : index
    %c1 = arith.constant 1 : index
    %c0_14 = arith.constant 0 : index
    %c0_15 = arith.constant 0 : index
    %17 = vector.load %arg4[%c0_13, %c1, %c0_14, %c0_15] : memref<1x3x8x128xf32, #tpu.memory_space<vmem>>, vector<1x1x8x128xf32>
    %18 = vector.shape_cast %17 : vector<1x1x8x128xf32> to vector<8x128xf32>
    %19 = vector.shape_cast %7 : vector<16x128xf32> to vector<2x8x128xf32>
    %cst_16 = arith.constant dense<0.000000e+00> : vector<8x128xf32>
    %20 = vector.multi_reduction <add>, %19, %cst_16 [0] : vector<2x8x128xf32> to vector<8x128xf32>
    %21 = arith.addf %18, %20 : vector<8x128xf32>
    %c0_17 = arith.constant 0 : index
    %c1_18 = arith.constant 1 : index
    %c0_19 = arith.constant 0 : index
    %c0_20 = arith.constant 0 : index
    %22 = vector.load %arg4[%c0_17, %c1_18, %c0_19, %c0_20] : memref<1x3x8x128xf32, #tpu.memory_space<vmem>>, vector<1x1x8x128xf32>
    %23 = vector.shape_cast %22 : vector<1x1x8x128xf32> to vector<8x128xf32>
    %24 = vector.shape_cast %21 : vector<8x128xf32> to vector<1x1x8x128xf32>
    tpu.vector_store %arg4[%c0_17, %c1_18, %c0_19, %c0_20], %24 {strides = array<i32>} : memref<1x3x8x128xf32, #tpu.memory_space<vmem>>, vector<1x1x8x128xf32>,
    %c0_21 = arith.constant 0 : index
    %c2 = arith.constant 2 : index
    %c0_22 = arith.constant 0 : index
    %c0_23 = arith.constant 0 : index
    %25 = vector.load %arg4[%c0_21, %c2, %c0_22, %c0_23] : memref<1x3x8x128xf32, #tpu.memory_space<vmem>>, vector<1x1x8x128xf32>
    %26 = vector.shape_cast %25 : vector<1x1x8x128xf32> to vector<8x128xf32>
    %27 = vector.shape_cast %4 : vector<16x128xf32> to vector<2x8x128xf32>
    %cst_24 = arith.constant dense<0.000000e+00> : vector<8x128xf32>
    %28 = vector.multi_reduction <add>, %27, %cst_24 [0] : vector<2x8x128xf32> to vector<8x128xf32>
    %29 = arith.addf %26, %28 : vector<8x128xf32>
    %c0_25 = arith.constant 0 : index
    %c2_26 = arith.constant 2 : index
    %c0_27 = arith.constant 0 : index
    %c0_28 = arith.constant 0 : index
    %30 = vector.load %arg4[%c0_25, %c2_26, %c0_27, %c0_28] : memref<1x3x8x128xf32, #tpu.memory_space<vmem>>, vector<1x1x8x128xf32>
    %31 = vector.shape_cast %30 : vector<1x1x8x128xf32> to vector<8x128xf32>
    %32 = vector.shape_cast %29 : vector<8x128xf32> to vector<1x1x8x128xf32>
    tpu.vector_store %arg4[%c0_25, %c2_26, %c0_27, %c0_28], %32 {strides = array<i32>} : memref<1x3x8x128xf32, #tpu.memory_space<vmem>>, vector<1x1x8x128xf32>,
    return
  }
  func.func @transform_0(%arg0: i32, %arg1: i32) -> (i32, i32) {
    %c1_i32 = arith.constant 1 : i32
    %0 = arith.muli %arg0, %c1_i32 : i32
    %1 = arith.addi %0, %arg1 : i32
    %c0_i32 = arith.constant 0 : i32
    %c0_i32_0 = arith.constant 0 : i32
    return %1, %c0_i32 : i32, i32
  }
  func.func @transform_1(%arg0: i32, %arg1: i32) -> (i32, i32) {
    %c1_i32 = arith.constant 1 : i32
    %0 = arith.muli %arg0, %c1_i32 : i32
    %1 = arith.addi %0, %arg1 : i32
    %c0_i32 = arith.constant 0 : i32
    %c0_i32_0 = arith.constant 0 : i32
    return %1, %c0_i32 : i32, i32
  }
  func.func @transform_2(%arg0: i32, %arg1: i32) -> (i32, i32, i32, i32) {
    %c0_i32 = arith.constant 0 : i32
    %c0_i32_0 = arith.constant 0 : i32
    %c0_i32_1 = arith.constant 0 : i32
    %c0_i32_2 = arith.constant 0 : i32
    return %arg0, %c0_i32, %c0_i32_0, %c0_i32_1 : i32, i32, i32, i32
  }
}

</mosaic_0001>

<llo_original>
// kernel: tpu_custom_call.1
$region0: #{tpu_custom_call.1}
  #allocation0 [shape = 'u32[]', space=smem, size = 0x4, offset = 0x4, fixed_abs, tag = 'smem constant byte address 0x4 - core index']
  #allocation1 [shape = 'u32[144,128]{1,0:T(1,128)}', space=vmem, size = 0x12000, scoped, tag = 'internal scratch']
  %s0 = inlined_call_operand.hbm [shape: f32[16,128], index: 0, kind: input, shape index: {}]
  %s1 = inlined_call_operand.hbm [shape: f32[16,128], index: 1, kind: input, shape index: {}]
  %s2 = inlined_call_operand.hbm [shape: f32[1,3,8,128], index: 2, kind: output, shape index: {}]
  %s3 = sld [smem:[#allocation0]]
  $region30: #{tpu_custom_call.1} parent=0
    _
  %s5 = ssub.s32 1, %s3
  %s6 = scalar_select 0, %s5, %s3
  $region1: #{tpu_custom_call.1} parent=0
    #allocation2 [shape = 'u8[8192]{0}', space=vmem, size = 0x2000, scoped, tag = 'input window, operand 0, single buffered']
    #allocation3 [shape = 's32[1]{0}', space=sflag, size = 0x4, scoped, tag = 'scoped memory for tpu_custom_call.1']
    #allocation4 [shape = 's32[1]{0}', space=sflag, size = 0x4, scoped, tag = 'scoped memory for tpu_custom_call.1']
    #allocation5 [shape = 'u8[8192]{0}', space=vmem, size = 0x2000, scoped, tag = 'input window, operand 1, single buffered']
    #allocation6 [shape = 's32[1]{0}', space=sflag, size = 0x4, scoped, tag = 'scoped memory for tpu_custom_call.1']
    #allocation7 [shape = 'u8[12288]{0}', space=vmem, size = 0x3000, scoped, tag = 'output window, operand 0, single buffered']
    %7 = vsyncpa [#allocation3], 0
    %8 = vsyncpa [#allocation6], 0
    %9 = vsyncpa [#allocation4], 0
    // Predicated region
    $region2: #{tpu_custom_call.1} parent=1 // pred_check
      _
    $region3: #{tpu_custom_call.1} parent=1 // pred_check_branch
      %11 = sbr.rel (0) target = $region5
    $region4: #{tpu_custom_call.1} parent=1 // pred_region
      %s12 = sadd.s32 0, 0
      %s13 = smul.u32 2, %s12
      %s15 = ssub.s32 256, 256
      %16 = vsyncadd [#allocation3], %s15
      %s17 = smul.addr %s13, 128
      %s18 = scalar_lea.hbm %s0, %s17
      %s19 = sshll.u32 [#allocation2], 4
      %s20 = int_to_ptr.vmem [resolvable:$true] %s19
      %25 = dma.hbm_to_vmem [thread:$0]  %s18, 256, %s20, [#allocation3], 128, 128, 8
    $region5: #{tpu_custom_call.1} parent=1 // pred_fallthru
      _
    // Predicated region
    $region6: #{tpu_custom_call.1} parent=1 // pred_check
      _
    $region7: #{tpu_custom_call.1} parent=1 // pred_check_branch
      %27 = sbr.rel (0) target = $region9
    $region8: #{tpu_custom_call.1} parent=1 // pred_region
      %s28 = sadd.s32 0, 0
      %s29 = smul.u32 2, %s28
      %s31 = ssub.s32 256, 256
      %32 = vsyncadd [#allocation6], %s31
      %s33 = smul.addr %s29, 128
      %s34 = scalar_lea.hbm %s1, %s33
      %s35 = sshll.u32 [#allocation5], 4
      %s36 = int_to_ptr.vmem [resolvable:$true] %s35
      %41 = dma.hbm_to_vmem [thread:$0]  %s34, 256, %s36, [#allocation6], 128, 128, 8
    $region9: #{tpu_custom_call.1} parent=1 // pred_fallthru
      _
    // Predicated region
    $region10: #{tpu_custom_call.1} parent=1 // pred_check
      _
    $region11: #{tpu_custom_call.1} parent=1 // pred_check_branch
      %43 = sbr.rel (0) target = $region13
    $region12: #{tpu_custom_call.1} parent=1 // pred_region
      %44 = dma.done [#allocation3], 256
    $region13: #{tpu_custom_call.1} parent=1 // pred_fallthru
      _
    // Predicated region
    $region14: #{tpu_custom_call.1} parent=1 // pred_check
      _
    $region15: #{tpu_custom_call.1} parent=1 // pred_check_branch
      %46 = sbr.rel (0) target = $region17
    $region16: #{tpu_custom_call.1} parent=1 // pred_region
      %47 = dma.done [#allocation6], 256
    $region17: #{tpu_custom_call.1} parent=1 // pred_fallthru
      _
    %s48 = sadd.s32 0, 0
    %s49 = smul.u32 2, %s48
    %s50 = sadd.s32 0, 0
    %s51 = smul.u32 2, %s50
    %p52 = scmp.eq.s32.totalorder 0, 0
    // Predicated region
    $region18: #{tpu_custom_call.1} parent=1 // pred_check
      %p53 = pneg %p52
    $region19: #{tpu_custom_call.1} parent=1 // pred_check_branch
      %55 = sbr.rel (%p53) target = $region21
    $region20: #{tpu_custom_call.1} parent=1 // pred_region
      %56 = vst [vmem:[#allocation7] sm:$0xff] 0.0
      %57 = vst [vmem:[#allocation7 + $0x8] sm:$0xff] 0.0
      %58 = vst [vmem:[#allocation7 + $0x10] sm:$0xff] 0.0
    $region21: #{tpu_custom_call.1} parent=1 // pred_fallthru
      _
    %v59 = vld [vmem:[#allocation2] sm:$0xff]
    %v60 = vld [vmem:[#allocation2 + $0x8] sm:$0xff]
    %v61 = vld [vmem:[#allocation5] sm:$0xff]
    %v62 = vld [vmem:[#allocation5 + $0x8] sm:$0xff]
    %v63 = vmul.f32 %v59, 0.5
    %v64 = vmul.f32 %v60, 0.5
    %v65 = vtanh.pop %v63
    %v66 = vtanh.pop %v64
    %v67 = vld [vmem:[#allocation7] sm:$0xff]
    %v68 = vmul.f32 %v61, %v65
    %v69 = vmul.f32 %v62, %v66
    %v70 = vadd.f32 %v68, %v69
    %v71 = vadd.f32 %v67, %v70
    %72 = vst [vmem:[#allocation7] sm:$0xff] %v71
    %s73 = scalar_lea.vmem [#allocation7], 8
    %v74 = vld [vmem:[%s73] sm:$0xff]
    %v75 = vadd.f32 %v65, %v66
    %v76 = vadd.f32 %v74, %v75
    %77 = vst [vmem:[%s73] sm:$0xff] %v76
    %s78 = scalar_lea.vmem [#allocation7], 16
    %v79 = vld [vmem:[%s78] sm:$0xff]
    %v80 = vadd.f32 %v61, %v62
    %v81 = vadd.f32 %v79, %v80
    %82 = vst [vmem:[%s78] sm:$0xff] %v81
    // Predicated region
    $region22: #{tpu_custom_call.1} parent=1 // pred_check
      _
    $region23: #{tpu_custom_call.1} parent=1 // pred_check_branch
      %84 = sbr.rel (0) target = $region25
    $region24: #{tpu_custom_call.1} parent=1 // pred_region
      %s86 = ssub.s32 384, 384
      %87 = vsyncadd [#allocation4], %s86
      %s88 = sshll.u32 [#allocation7], 4
      %s89 = int_to_ptr.vmem [resolvable:$true] %s88
      %94 = dma.vmem_to_hbm [thread:$0]  %s89, 384, %s2, [#allocation4], 128, 128, 8
    $region25: #{tpu_custom_call.1} parent=1 // pred_fallthru
      _
    // Predicated region
    $region26: #{tpu_custom_call.1} parent=1 // pred_check
      _
    $region27: #{tpu_custom_call.1} parent=1 // pred_check_branch
      %96 = sbr.rel (0) target = $region29
    $region28: #{tpu_custom_call.1} parent=1 // pred_region
      %97 = dma.done [#allocation4], 384
    $region29: #{tpu_custom_call.1} parent=1 // pred_fallthru
      _
    %98 = vsyncpa [#allocation3], 1
    %99 = vsyncpa [#allocation6], 1
    %100 = vsyncpa [#allocation4], 1

</llo_original>
